<compile_context>
chip_gen: v5e
topology: v5e:2x2
jax: 0.10.0
libtpu: 0.0.40
codegen_flags: <defaults>
</compile_context>

<pallas_src>
import functools

import jax
import jax.numpy as jnp
from jax.experimental import pallas as pl
from jax.experimental.pallas import tpu as pltpu

ALPHA = 0.25
GAMMA = 2.0          # hard-coded below as x*x (pow(x, 2)); keeps the EUP for logs
EPS = 1e-07

LANES = 128
ACC_ROWS = 8         # sublanes of the vreg-shaped accumulator
CHUNK_MAX = 64       # rows per inner-loop step (keeps live vregs well under 64)


@functools.lru_cache(maxsize=1)
def _tpu_generation():
    """Best-effort TPU generation from device_kind; 0 if unknown / not TPU."""
    try:
        dev = jax.devices()[0]
        if dev.platform != "tpu":
            return 0
        kind = dev.device_kind.lower()
    except Exception:
        return 0
    for g in (7, 6, 5, 4, 3, 2):
        if f"v{g}" in kind or f"tpu{g}" in kind:
            return g
    return 0


def _elemwise_loss(p, lbl):
    """Per-element focal loss, exactly the PyTorch forward (two-log form)."""
    one_m_p = 1.0 - p
    loss_1 = (-ALPHA) * (one_m_p * one_m_p) * jnp.log(p + EPS) * lbl
    loss_0 = (-(1.0 - ALPHA)) * (p * p) * jnp.log(one_m_p + EPS) * (1.0 - lbl)
    return loss_0 + loss_1


def _focal_loss_kernel(p_ref, l_ref, o_ref, *, tm, chunk, bpc, m_rows, ncores,
                       compute_dtype):
    if ncores > 1:
        c = pl.program_id(0)      # TensorCore split (v7x only)
        i = pl.program_id(1)      # reduction axis: row-blocks of this core
    else:
        c = 0
        i = pl.program_id(0)

    @pl.when(i == 0)
    def _():
        o_ref[...] = jnp.zeros_like(o_ref)

    block_start = (c * bpc + i) * tm      # global first row covered by this block
    n_chunks = tm // chunk

    def chunk_partial(s, masked):
        r0 = s * chunk
        if not isinstance(r0, int):
            r0 = pl.multiple_of(r0, chunk)
        p = p_ref[pl.ds(r0, chunk), :].astype(compute_dtype)
        lbl = l_ref[pl.ds(r0, chunk), :].astype(compute_dtype)
        loss = _elemwise_loss(p, lbl).astype(jnp.float32)
        if masked:
            # Rows at/after `m_rows` (ragged last block, or a fully clamped
            # duplicate block on the 2-core split) are discarded with a TRUE
            # select, so NaN/Inf from log() of undefined data never leaks.
            limit = m_rows - block_start - r0                  # scalar
            row = jax.lax.broadcasted_iota(jnp.int32, (chunk, LANES), 0)
            loss = jnp.where(row < limit, loss, 0.0)
        # Fold the chunk into one vreg-shaped (8,128) partial sum (VPU adds).
        return loss.reshape(chunk // ACC_ROWS, ACC_ROWS, LANES).sum(axis=0)

    def accumulate(masked):
        if n_chunks == 1:
            o_ref[...] += chunk_partial(0, masked)
        else:
            acc = jax.lax.fori_loop(
                0, n_chunks,
                lambda s, a: a + chunk_partial(s, masked),
                jnp.zeros((ACC_ROWS, LANES), jnp.float32),
                unroll=n_chunks if n_chunks <= 8 else 4)
            o_ref[...] += acc

    # Fast path: the whole block lies inside the valid row range -> no mask.
    @pl.when(block_start + tm <= m_rows)
    def _():
        accumulate(masked=False)

    # Slow path: block extends past the last valid row -> per-row select.
    @pl.when(block_start + tm > m_rows)
    def _():
        accumulate(masked=True)


def _focal_loss_partial_sums(p2d, l2d, *, gen):
    """Pallas streaming reduction over a (m_rows, 128) slab of valid rows.

    Returns an (ncores*8, 128) float32 slab of partial sums (summed by caller).
    """
    m_rows = p2d.shape[0]

    ncores = 2 if gen >= 7 else 1          # only v7x has 2 TensorCores per chip
    tm_max = 4096 if gen >= 6 else 2048    # fits 32 MiB (v6e/v7x) / 16 MiB (v5e)
                                           # default scoped VMEM, even 3-buffered
    tm = min(tm_max, (m_rows // ACC_ROWS) * ACC_ROWS)
    if ncores > 1 and m_rows >= 2 * ncores * ACC_ROWS:
        # Keep >= 2 row-blocks per TensorCore so neither core is starved.
        tm = min(tm, max(ACC_ROWS,
                         (pl.cdiv(m_rows, 2 * ncores) // ACC_ROWS) * ACC_ROWS))

    blocks = pl.cdiv(m_rows, tm)
    bpc = pl.cdiv(blocks, ncores)

    chunk = CHUNK_MAX
    while tm % chunk:                      # tm is a multiple of 8
        chunk //= 2

    # bf16 pointwise math only where VPU/EUP have bf16 paths (v6e / v7x).
    if gen >= 6 and p2d.dtype == jnp.bfloat16 and l2d.dtype == jnp.bfloat16:
        compute_dtype = jnp.bfloat16
    else:
        compute_dtype = jnp.float32

    kernel = functools.partial(
        _focal_loss_kernel, tm=tm, chunk=chunk, bpc=bpc, m_rows=m_rows,
        ncores=ncores, compute_dtype=compute_dtype)

    # 3-deep input pipelining hides DMA jitter once the reduction is long enough.
    pipe = pl.Buffered(3) if bpc >= 3 else None

    def make_in_spec(index_map):
        if pipe is None:
            return pl.BlockSpec((tm, LANES), index_map)
        return pl.BlockSpec((tm, LANES), index_map, pipeline_mode=pipe)

    if ncores > 1:
        def in_map(c, i):
            # Clamp so trailing steps of the last core re-read the final valid
            # block instead of issuing an out-of-bounds DMA; the kernel masks
            # their contribution to exactly zero.
            return (jnp.minimum(c * bpc + i, blocks - 1), 0)
        grid = (ncores, bpc)
        out_map = lambda c, i: (c, 0)
    else:
        def in_map(i):
            return (i, 0)
        grid = (bpc,)
        out_map = lambda i: (0, 0)

    def build(dim_sem):
        return pl.pallas_call(
            kernel,
            out_shape=jax.ShapeDtypeStruct((ncores * ACC_ROWS, LANES), jnp.float32),
            grid_spec=pltpu.PrefetchScalarGridSpec(
                num_scalar_prefetch=0,
                grid=grid,
                in_specs=[make_in_spec(in_map), make_in_spec(in_map)],
                out_specs=pl.BlockSpec((ACC_ROWS, LANES), out_map),
            ),
            compiler_params=pltpu.CompilerParams(dimension_semantics=dim_sem),
        )

    if ncores > 1:
        try:
            # Real 2-TensorCore split on v7x.
            return build((pltpu.CORE_PARALLEL, pltpu.ARBITRARY))(p2d, l2d)
        except Exception:
            # Fall back to generic semantics if CORE_PARALLEL is rejected.
            return build(("parallel", "arbitrary"))(p2d, l2d)
    return build(("arbitrary",))(p2d, l2d)


def focal_loss(preds, labels):
    """Binary focal loss (mean over all elements), matching the PyTorch module."""
    assert preds.shape == labels.shape
    n = int(preds.size)
    if n == 0:
        # torch.mean of an empty tensor is NaN; keep that behaviour.
        return jnp.array(jnp.nan, dtype=jnp.float32)

    gen = _tpu_generation()

    p = preds.reshape(-1)
    l = labels.reshape(-1)

    m_rows = n // LANES
    n_main = m_rows * LANES

    total = jnp.zeros((), jnp.float32)
    tail_start = 0
    if m_rows >= ACC_ROWS:
        # Lane-aligned prefix -> Pallas streaming reduction.  When n is already
        # a multiple of 128 (the common case) the reshape is a zero-copy
        # metadata change; otherwise only the aligned prefix is sliced — no
        # full-array pad copy in either case.
        if n_main == n:
            p_main, l_main = p, l
        else:
            p_main, l_main = p[:n_main], l[:n_main]
        part = _focal_loss_partial_sums(
            p_main.reshape(m_rows, LANES), l_main.reshape(m_rows, LANES), gen=gen)
        total = total + jnp.sum(part)
        tail_start = n_main

    if tail_start < n:
        # <128-element ragged tail (or the whole input when it is tiny): plain
        # jnp keeps the wrapper free of padding copies.
        pt = p[tail_start:].astype(jnp.float32)
        lt = l[tail_start:].astype(jnp.float32)
        total = total + jnp.sum(_elemwise_loss(pt, lt))

    return total * (1.0 / n)


def focal_loss_ref(preds, labels):
    """Pure-JAX reference (mirrors the PyTorch forward exactly)."""
    loss_1 = -1.0 * ALPHA * jnp.power(1.0 - preds, GAMMA) * jnp.log(preds + EPS) * labels
    loss_0 = -1.0 * (1.0 - ALPHA) * jnp.power(preds, GAMMA) * jnp.log(1.0 - preds + EPS) * (1.0 - labels)
    return jnp.mean(loss_0 + loss_1)


if __name__ == "__main__":
    key = jax.random.PRNGKey(0)
    k1, k2, k3, k4 = jax.random.split(key, 4)

    # preds are "sigmoid outputs" -> in (0,1); labels are binary.
    shape = (2, 4, 16, 16)
    preds = jax.nn.sigmoid(jax.random.normal(k1, shape, dtype=jnp.float32))
    labels = (jax.random.uniform(k2, shape) > 0.5).astype(jnp.float32)

    loss = focal_loss(preds, labels)
    jax.block_until_ready(loss)
    ref = focal_loss_ref(preds, labels)
    assert jnp.allclose(loss, ref, rtol=1e-5, atol=1e-6), (loss, ref)

    # Ragged size: exercises the masked last block + jnp tail (no padding path).
    shape2 = (3, 5, 7, 13)   # 1365 elements: 10 full lane-rows + 85-elem tail
    preds2 = jax.nn.sigmoid(jax.random.normal(k3, shape2, dtype=jnp.float32))
    labels2 = (jax.random.uniform(k4, shape2) > 0.5).astype(jnp.float32)

    loss2 = focal_loss(preds2, labels2)
    jax.block_until_ready(loss2)
    ref2 = focal_loss_ref(preds2, labels2)
    assert jnp.allclose(loss2, ref2, rtol=1e-5, atol=1e-6), (loss2, ref2)

    print("KERNEL_OK")
</pallas_src>

<mosaic_0001>
module attributes {stable_mosaic.version = 11 : i64} {
  func.func @_focal_loss_kernel(%arg0: i32, %arg1: memref<16x128xf32, #tpu.memory_space<vmem>>, %arg2: memref<16x128xf32, #tpu.memory_space<vmem>>, %arg3: memref<8x128xf32, #tpu.memory_space<vmem>>) attributes {dimension_semantics = [#tpu.dimension_semantics<arbitrary>], iteration_bounds = array<i64: 1>, scalar_prefetch = 0 : i64, scratch_operands = 0 : i64, tpu.core_type = #tpu.core_type<tc>, window_params = [{transform_indices = @transform_0, window_bounds = array<i64: 16, 128>}, {transform_indices = @transform_1, window_bounds = array<i64: 16, 128>}, {pipeline_mode = #tpu.pipeline_mode<synchronous>, transform_indices = @transform_2, window_bounds = array<i64: 8, 128>}]} {
    %c0_i32 = arith.constant 0 : i32
    %0 = arith.cmpi eq, %arg0, %c0_i32 : i32
    %1 = arith.extui %0 : i1 to i32
    %c0_i32_0 = arith.constant 0 : i32
    %2 = arith.cmpi ne, %1, %c0_i32_0 : i32
    scf.if %2 {
      %cst = arith.constant 0.000000e+00 : f32
      %13 = vector.broadcast %cst : f32 to vector<8x128xf32>
      %c0 = arith.constant 0 : index
      %c0_8 = arith.constant 0 : index
      %14 = vector.load %arg3[%c0, %c0_8] : memref<8x128xf32, #tpu.memory_space<vmem>>, vector<8x128xf32>
      tpu.vector_store %arg3[%c0, %c0_8], %13 {strides = array<i32>} : memref<8x128xf32, #tpu.memory_space<vmem>>, vector<8x128xf32>,
    } else {
    }
    %c0_i32_1 = arith.constant 0 : i32
    %3 = arith.addi %c0_i32_1, %arg0 : i32
    %c16_i32 = arith.constant 16 : i32
    %4 = arith.muli %3, %c16_i32 : i32
    %c16_i32_2 = arith.constant 16 : i32
    %5 = arith.addi %4, %c16_i32_2 : i32
    %c16_i32_3 = arith.constant 16 : i32
    %6 = arith.cmpi sle, %5, %c16_i32_3 : i32
    %7 = arith.extui %6 : i1 to i32
    %c0_i32_4 = arith.constant 0 : i32
    %8 = arith.cmpi ne, %7, %c0_i32_4 : i32
    scf.if %8 {
      %c0 = arith.constant 0 : index
      %c0_8 = arith.constant 0 : index
      %13 = vector.load %arg3[%c0, %c0_8] : memref<8x128xf32, #tpu.memory_space<vmem>>, vector<8x128xf32>
      %c0_9 = arith.constant 0 : index
      %c0_10 = arith.constant 0 : index
      %14 = vector.load %arg1[%c0_9, %c0_10] : memref<16x128xf32, #tpu.memory_space<vmem>>, vector<16x128xf32>
      %c0_11 = arith.constant 0 : index
      %c0_12 = arith.constant 0 : index
      %15 = vector.load %arg2[%c0_11, %c0_12] : memref<16x128xf32, #tpu.memory_space<vmem>>, vector<16x128xf32>
      %cst = arith.constant 1.000000e+00 : f32
      %16 = vector.broadcast %cst : f32 to vector<16x128xf32>
      %17 = arith.subf %16, %14 : vector<16x128xf32>
      %18 = arith.mulf %17, %17 : vector<16x128xf32>
      %cst_13 = arith.constant -2.500000e-01 : f32
      %19 = vector.broadcast %cst_13 : f32 to vector<16x128xf32>
      %20 = arith.mulf %19, %18 : vector<16x128xf32>
      %cst_14 = arith.constant 1.000000e-07 : f32
      %21 = vector.broadcast %cst_14 : f32 to vector<16x128xf32>
      %22 = arith.addf %14, %21 : vector<16x128xf32>
      %23 = math.log %22 : vector<16x128xf32>
      %24 = arith.mulf %20, %23 : vector<16x128xf32>
      %25 = arith.mulf %24, %15 : vector<16x128xf32>
      %26 = arith.mulf %14, %14 : vector<16x128xf32>
      %cst_15 = arith.constant -7.500000e-01 : f32
      %27 = vector.broadcast %cst_15 : f32 to vector<16x128xf32>
      %28 = arith.mulf %27, %26 : vector<16x128xf32>
      %cst_16 = arith.constant 1.000000e-07 : f32
      %29 = vector.broadcast %cst_16 : f32 to vector<16x128xf32>
      %30 = arith.addf %17, %29 : vector<16x128xf32>
      %31 = math.log %30 : vector<16x128xf32>
      %32 = arith.mulf %28, %31 : vector<16x128xf32>
      %cst_17 = arith.constant 1.000000e+00 : f32
      %33 = vector.broadcast %cst_17 : f32 to vector<16x128xf32>
      %34 = arith.subf %33, %15 : vector<16x128xf32>
      %35 = arith.mulf %32, %34 : vector<16x128xf32>
      %36 = arith.addf %35, %25 : vector<16x128xf32>
      %37 = vector.shape_cast %36 : vector<16x128xf32> to vector<2x8x128xf32>
      %cst_18 = arith.constant dense<0.000000e+00> : vector<8x128xf32>
      %38 = vector.multi_reduction <add>, %37, %cst_18 [0] : vector<2x8x128xf32> to vector<8x128xf32>
      %39 = arith.addf %13, %38 : vector<8x128xf32>
      %c0_19 = arith.constant 0 : index
      %c0_20 = arith.constant 0 : index
      %40 = vector.load %arg3[%c0_19, %c0_20] : memref<8x128xf32, #tpu.memory_space<vmem>>, vector<8x128xf32>
      tpu.vector_store %arg3[%c0_19, %c0_20], %39 {strides = array<i32>} : memref<8x128xf32, #tpu.memory_space<vmem>>, vector<8x128xf32>,
    } else {
    }
    %c16_i32_5 = arith.constant 16 : i32
    %9 = arith.addi %4, %c16_i32_5 : i32
    %c16_i32_6 = arith.constant 16 : i32
    %10 = arith.cmpi sgt, %9, %c16_i32_6 : i32
    %11 = arith.extui %10 : i1 to i32
    %c0_i32_7 = arith.constant 0 : i32
    %12 = arith.cmpi ne, %11, %c0_i32_7 : i32
    scf.if %12 {
      %c0 = arith.constant 0 : index
      %c0_8 = arith.constant 0 : index
      %13 = vector.load %arg3[%c0, %c0_8] : memref<8x128xf32, #tpu.memory_space<vmem>>, vector<8x128xf32>
      %c0_9 = arith.constant 0 : index
      %c0_10 = arith.constant 0 : index
      %14 = vector.load %arg1[%c0_9, %c0_10] : memref<16x128xf32, #tpu.memory_space<vmem>>, vector<16x128xf32>
      %c0_11 = arith.constant 0 : index
      %c0_12 = arith.constant 0 : index
      %15 = vector.load %arg2[%c0_11, %c0_12] : memref<16x128xf32, #tpu.memory_space<vmem>>, vector<16x128xf32>
      %cst = arith.constant 1.000000e+00 : f32
      %16 = vector.broadcast %cst : f32 to vector<16x128xf32>
      %17 = arith.subf %16, %14 : vector<16x128xf32>
      %18 = arith.mulf %17, %17 : vector<16x128xf32>
      %cst_13 = arith.constant -2.500000e-01 : f32
      %19 = vector.broadcast %cst_13 : f32 to vector<16x128xf32>
      %20 = arith.mulf %19, %18 : vector<16x128xf32>
      %cst_14 = arith.constant 1.000000e-07 : f32
      %21 = vector.broadcast %cst_14 : f32 to vector<16x128xf32>
      %22 = arith.addf %14, %21 : vector<16x128xf32>
      %23 = math.log %22 : vector<16x128xf32>
      %24 = arith.mulf %20, %23 : vector<16x128xf32>
      %25 = arith.mulf %24, %15 : vector<16x128xf32>
      %26 = arith.mulf %14, %14 : vector<16x128xf32>
      %cst_15 = arith.constant -7.500000e-01 : f32
      %27 = vector.broadcast %cst_15 : f32 to vector<16x128xf32>
      %28 = arith.mulf %27, %26 : vector<16x128xf32>
      %cst_16 = arith.constant 1.000000e-07 : f32
      %29 = vector.broadcast %cst_16 : f32 to vector<16x128xf32>
      %30 = arith.addf %17, %29 : vector<16x128xf32>
      %31 = math.log %30 : vector<16x128xf32>
      %32 = arith.mulf %28, %31 : vector<16x128xf32>
      %cst_17 = arith.constant 1.000000e+00 : f32
      %33 = vector.broadcast %cst_17 : f32 to vector<16x128xf32>
      %34 = arith.subf %33, %15 : vector<16x128xf32>
      %35 = arith.mulf %32, %34 : vector<16x128xf32>
      %36 = arith.addf %35, %25 : vector<16x128xf32>
      %c16_i32_18 = arith.constant 16 : i32
      %37 = arith.subi %c16_i32_18, %4 : i32
      %c0_i32_19 = arith.constant 0 : i32
      %38 = arith.subi %37, %c0_i32_19 : i32
      %39 = tpu.iota {dimensions = array<i32: 0>} : vector<16x128xi32>
      %40 = vector.broadcast %38 : i32 to vector<16x128xi32>
      %41 = arith.cmpi slt, %39, %40 : vector<16x128xi32>
      %cst_20 = arith.constant 0.000000e+00 : f32
      %42 = vector.broadcast %cst_20 : f32 to vector<16x128xf32>
      %43 = arith.select %41, %36, %42 : vector<16x128xi1>, vector<16x128xf32>
      %44 = vector.shape_cast %43 : vector<16x128xf32> to vector<2x8x128xf32>
      %cst_21 = arith.constant dense<0.000000e+00> : vector<8x128xf32>
      %45 = vector.multi_reduction <add>, %44, %cst_21 [0] : vector<2x8x128xf32> to vector<8x128xf32>
      %46 = arith.addf %13, %45 : vector<8x128xf32>
      %c0_22 = arith.constant 0 : index
      %c0_23 = arith.constant 0 : index
      %47 = vector.load %arg3[%c0_22, %c0_23] : memref<8x128xf32, #tpu.memory_space<vmem>>, vector<8x128xf32>
      tpu.vector_store %arg3[%c0_22, %c0_23], %46 {strides = array<i32>} : memref<8x128xf32, #tpu.memory_space<vmem>>, vector<8x128xf32>,
    } else {
    }
    return
  }
  func.func @transform_0(%arg0: i32) -> (i32, i32) {
    %c0_i32 = arith.constant 0 : i32
    %c0_i32_0 = arith.constant 0 : i32
    return %arg0, %c0_i32 : i32, i32
  }
  func.func @transform_1(%arg0: i32) -> (i32, i32) {
    %c0_i32 = arith.constant 0 : i32
    %c0_i32_0 = arith.constant 0 : i32
    return %arg0, %c0_i32 : i32, i32
  }
  func.func @transform_2(%arg0: i32) -> (i32, i32) {
    %c0_i32 = arith.constant 0 : i32
    %c0_i32_0 = arith.constant 0 : i32
    %c0_i32_1 = arith.constant 0 : i32
    return %c0_i32, %c0_i32_0 : i32, i32
  }
}

</mosaic_0001>

<llo_original>
// kernel: tpu_custom_call.1
$region0: #{tpu_custom_call.1}
  #allocation0 [shape = 'u32[]', space=smem, size = 0x4, offset = 0x4, fixed_abs, tag = 'smem constant byte address 0x4 - core index']
  #allocation1 [shape = 'u32[72,128]{1,0:T(1,128)}', space=vmem, size = 0x9000, scoped, tag = 'internal scratch']
  %s0 = inlined_call_operand.hbm [shape: f32[16,128], index: 0, kind: input, shape index: {}]
  %s1 = inlined_call_operand.hbm [shape: f32[16,128], index: 1, kind: input, shape index: {}]
  %s2 = inlined_call_operand.hbm [shape: f32[8,128], index: 2, kind: output, shape index: {}]
  %s3 = sld [smem:[#allocation0]]
  $region38: #{tpu_custom_call.1} parent=0
    _
  %s5 = ssub.s32 1, %s3
  %s6 = scalar_select 0, %s5, %s3
  $region1: #{tpu_custom_call.1} parent=0
    #allocation2 [shape = 'u8[8192]{0}', space=vmem, size = 0x2000, scoped, tag = 'input window, operand 0, single buffered']
    #allocation3 [shape = 's32[1]{0}', space=sflag, size = 0x4, scoped, tag = 'scoped memory for tpu_custom_call.1']
    #allocation4 [shape = 's32[1]{0}', space=sflag, size = 0x4, scoped, tag = 'scoped memory for tpu_custom_call.1']
    #allocation5 [shape = 'u8[8192]{0}', space=vmem, size = 0x2000, scoped, tag = 'input window, operand 1, single buffered']
    #allocation6 [shape = 's32[1]{0}', space=sflag, size = 0x4, scoped, tag = 'scoped memory for tpu_custom_call.1']
    #allocation7 [shape = 'u8[4096]{0}', space=vmem, size = 0x1000, scoped, tag = 'output window, operand 0, single buffered']
    %7 = vsyncpa [#allocation3], 0
    %8 = vsyncpa [#allocation6], 0
    %9 = vsyncpa [#allocation4], 0
    // Predicated region
    $region2: #{tpu_custom_call.1} parent=1 // pred_check
      _
    $region3: #{tpu_custom_call.1} parent=1 // pred_check_branch
      %11 = sbr.rel (0) target = $region5
    $region4: #{tpu_custom_call.1} parent=1 // pred_region
      %13 = vsyncadd [#allocation3], 0
      %s14 = sshll.u32 %s0, 4
      %s15 = int_to_ptr.hbm [resolvable:$true] %s14
      %s16 = sshll.u32 [#allocation2], 4
      %s17 = int_to_ptr.vmem [resolvable:$true] %s16
      %22 = dma.hbm_to_vmem [thread:$0]  %s15, 256, %s17, [#allocation3], 128, 128, 8
    $region5: #{tpu_custom_call.1} parent=1 // pred_fallthru
      _
    // Predicated region
    $region6: #{tpu_custom_call.1} parent=1 // pred_check
      _
    $region7: #{tpu_custom_call.1} parent=1 // pred_check_branch
      %24 = sbr.rel (0) target = $region9
    $region8: #{tpu_custom_call.1} parent=1 // pred_region
      %26 = vsyncadd [#allocation6], 0
      %s27 = sshll.u32 %s1, 4
      %s28 = int_to_ptr.hbm [resolvable:$true] %s27
      %s29 = sshll.u32 [#allocation5], 4
      %s30 = int_to_ptr.vmem [resolvable:$true] %s29
      %35 = dma.hbm_to_vmem [thread:$0]  %s28, 256, %s30, [#allocation6], 128, 128, 8
    $region9: #{tpu_custom_call.1} parent=1 // pred_fallthru
      _
    // Predicated region
    $region10: #{tpu_custom_call.1} parent=1 // pred_check
      _
    $region11: #{tpu_custom_call.1} parent=1 // pred_check_branch
      %37 = sbr.rel (0) target = $region13
    $region12: #{tpu_custom_call.1} parent=1 // pred_region
      %39 = dma.done [#allocation3], 256
    $region13: #{tpu_custom_call.1} parent=1 // pred_fallthru
      _
    // Predicated region
    $region14: #{tpu_custom_call.1} parent=1 // pred_check
      _
    $region15: #{tpu_custom_call.1} parent=1 // pred_check_branch
      %41 = sbr.rel (0) target = $region17
    $region16: #{tpu_custom_call.1} parent=1 // pred_region
      %43 = dma.done [#allocation6], 256
    $region17: #{tpu_custom_call.1} parent=1 // pred_fallthru
      _
    %p44 = scmp.eq.s32.totalorder 0, 0
    // Predicated region
    $region18: #{tpu_custom_call.1} parent=1 // pred_check
      %p45 = pneg %p44
    $region19: #{tpu_custom_call.1} parent=1 // pred_check_branch
      %47 = sbr.rel (%p45) target = $region21
    $region20: #{tpu_custom_call.1} parent=1 // pred_region
      %48 = vst [vmem:[#allocation7] sm:$0xff] 0.0
    $region21: #{tpu_custom_call.1} parent=1 // pred_fallthru
      _
    %s49 = smul.u32 0, 16
    %s50 = sadd.s32 %s49, 16
    %p51 = scmp.le.s32.totalorder %s50, 16
    // Predicated region
    $region22: #{tpu_custom_call.1} parent=1 // pred_check
      %p52 = pneg %p51
    $region23: #{tpu_custom_call.1} parent=1 // pred_check_branch
      %54 = sbr.rel (%p52) target = $region25
    $region24: #{tpu_custom_call.1} parent=1 // pred_region
      %v55 = vld [vmem:[#allocation7] sm:$0xff]
      %v56 = vld [vmem:[#allocation2] sm:$0xff]
      %v57 = vld [vmem:[#allocation2 + $0x8] sm:$0xff]
      %v58 = vld [vmem:[#allocation5] sm:$0xff]
      %v59 = vld [vmem:[#allocation5 + $0x8] sm:$0xff]
      %v60 = vsub.f32 1.0, %v56
      %v61 = vsub.f32 1.0, %v57
      %v62 = vmul.f32 %v60, %v60
      %v63 = vmul.f32 %v61, %v61
      %v64 = vmul.f32 %v62, -0.25
      %v65 = vmul.f32 %v63, -0.25
      %v66 = vadd.f32 %v56, 1e-07
      %v67 = vadd.f32 %v57, 1e-07
      %v68 = vlog2.pop %v66
      %v69 = vmul.f32 %v68, 0.6931472
      %v70 = vlog2.pop %v67
      %v71 = vmul.f32 %v70, 0.6931472
      %v72 = vmul.f32 %v64, %v69
      %v73 = vmul.f32 %v65, %v71
      %v74 = vmul.f32 %v72, %v58
      %v75 = vmul.f32 %v73, %v59
      %v76 = vmul.f32 %v56, %v56
      %v77 = vmul.f32 %v57, %v57
      %v78 = vmul.f32 %v76, -0.75
      %v79 = vmul.f32 %v77, -0.75
      %v80 = vadd.f32 %v60, 1e-07
      %v81 = vadd.f32 %v61, 1e-07
      %v82 = vlog2.pop %v80
      %v83 = vmul.f32 %v82, 0.6931472
      %v84 = vlog2.pop %v81
      %v85 = vmul.f32 %v84, 0.6931472
      %v86 = vmul.f32 %v78, %v83
      %v87 = vmul.f32 %v79, %v85
      %v88 = vsub.f32 1.0, %v58
      %v89 = vsub.f32 1.0, %v59
      %v90 = vmul.f32 %v86, %v88
      %v91 = vmul.f32 %v87, %v89
      %v92 = vadd.f32 %v90, %v74
      %v93 = vadd.f32 %v91, %v75
      %v94 = vadd.f32 %v92, %v93
      %v95 = vadd.f32 %v55, %v94
      %96 = vst [vmem:[#allocation7] sm:$0xff] %v95
    $region25: #{tpu_custom_call.1} parent=1 // pred_fallthru
      _
    %p97 = scmp.gt.s32.totalorder %s50, 16
    // Predicated region
    $region26: #{tpu_custom_call.1} parent=1 // pred_check
      %p98 = pneg %p97
    $region27: #{tpu_custom_call.1} parent=1 // pred_check_branch
      %100 = sbr.rel (%p98) target = $region29
    $region28: #{tpu_custom_call.1} parent=1 // pred_region
      %v101 = vld [vmem:[#allocation7] sm:$0xff]
      %v102 = vld [vmem:[#allocation2] sm:$0xff]
      %v103 = vld [vmem:[#allocation2 + $0x8] sm:$0xff]
      %v104 = vld [vmem:[#allocation5] sm:$0xff]
      %v105 = vld [vmem:[#allocation5 + $0x8] sm:$0xff]
      %v106 = vsub.f32 1.0, %v102
      %v107 = vsub.f32 1.0, %v103
      %v108 = vmul.f32 %v106, %v106
      %v109 = vmul.f32 %v107, %v107
      %v110 = vmul.f32 %v108, -0.25
      %v111 = vmul.f32 %v109, -0.25
      %v112 = vadd.f32 %v102, 1e-07
      %v113 = vadd.f32 %v103, 1e-07
      %v114 = vlog2.pop %v112
      %v115 = vmul.f32 %v114, 0.6931472
      %v116 = vlog2.pop %v113
      %v117 = vmul.f32 %v116, 0.6931472
      %v118 = vmul.f32 %v110, %v115
      %v119 = vmul.f32 %v111, %v117
      %v120 = vmul.f32 %v118, %v104
      %v121 = vmul.f32 %v119, %v105
      %v122 = vmul.f32 %v102, %v102
      %v123 = vmul.f32 %v103, %v103
      %v124 = vmul.f32 %v122, -0.75
      %v125 = vmul.f32 %v123, -0.75
      %v126 = vadd.f32 %v106, 1e-07
      %v127 = vadd.f32 %v107, 1e-07
      %v128 = vlog2.pop %v126
      %v129 = vmul.f32 %v128, 0.6931472
      %v130 = vlog2.pop %v127
      %v131 = vmul.f32 %v130, 0.6931472
      %v132 = vmul.f32 %v124, %v129
      %v133 = vmul.f32 %v125, %v131
      %v134 = vsub.f32 1.0, %v104
      %v135 = vsub.f32 1.0, %v105
      %v136 = vmul.f32 %v132, %v134
      %v137 = vmul.f32 %v133, %v135
      %v138 = vadd.f32 %v136, %v120
      %v139 = vadd.f32 %v137, %v121
      %s140 = ssub.s32 16, %s49
      %v141 = vlaneseq
      %v142 = vshrl.u32 %v141, 7
      %v143 = vadd.s32 %v142, 8
      %v144 = vstv %s140
      %vm145 = vcmp.lt.s32.totalorder %v142, %v144
      %vm146 = vcmp.lt.s32.totalorder %v143, %v144
      %v147 = vsel %vm145, %v138, 0.0
      %v148 = vsel %vm146, %v139, 0.0
      %v149 = vadd.f32 %v147, %v148
      %v150 = vadd.f32 %v101, %v149
      %151 = vst [vmem:[#allocation7] sm:$0xff] %v150
    $region29: #{tpu_custom_call.1} parent=1 // pred_fallthru
      _
    // Predicated region
    $region30: #{tpu_custom_call.1} parent=1 // pred_check
      _
    $region31: #{tpu_custom_call.1} parent=1 // pred_check_branch
      %153 = sbr.rel (0) target = $region33
    $region32: #{tpu_custom_call.1} parent=1 // pred_region
      %155 = vsyncadd [#allocation4], 0
      %s157 = sshll.u32 [#allocation7], 4
      %s158 = int_to_ptr.vmem [resolvable:$true] %s157
      %s159 = sshll.u32 %s2, 4
      %s160 = int_to_ptr.hbm [resolvable:$true] %s159
      %162 = dma.vmem_to_hbm [thread:$0]  %s158, 128, %s160, [#allocation4]
    $region33: #{tpu_custom_call.1} parent=1 // pred_fallthru
      _
    // Predicated region
    $region34: #{tpu_custom_call.1} parent=1 // pred_check
      _
    $region35: #{tpu_custom_call.1} parent=1 // pred_check_branch
      %164 = sbr.rel (0) target = $region37
    $region36: #{tpu_custom_call.1} parent=1 // pred_region
      %166 = dma.done [#allocation4], 128
    $region37: #{tpu_custom_call.1} parent=1 // pred_fallthru
      _
    %167 = vsyncpa [#allocation3], 1
    %168 = vsyncpa [#allocation6], 1
    %169 = vsyncpa [#allocation4], 1

</llo_original>
